<compile_context>
chip_gen: v6e
topology: v6e:2x2x1
jax: 0.10.0
libtpu: 0.0.40
codegen_flags: <defaults>
</compile_context>

<pallas_src>
import functools

import jax
import jax.numpy as jnp
from jax.experimental import pallas as pl
from jax.experimental.pallas import tpu as pltpu

# ---------------- config (mirrors the PyTorch `config` dict) ----------------
CONFIG = {"hidden": 32, "latent": 16}

LANE = 128

_COMPILER_PARAMS = pltpu.CompilerParams(
    # rows of A_hat are independent -> shard across TensorCores; k is a
    # reduction into the scratch accumulator.
    dimension_semantics=("parallel", "arbitrary"),
)


def _round_up(x, m):
    return (x + m - 1) // m * m


def _choose_tiles(n):
    """Pick (n_pad, tm, tk).  tk must be a multiple of 128 (lane dim of the A
    block) unless it equals the full padded size; tm a multiple of 8."""
    n8 = _round_up(max(n, 8), 8)
    if n8 <= 512:
        return n8, n8, n8  # single block per axis, everything resident
    best = None
    for t in (512, 384, 256, 128):
        n_pad = _round_up(n8, t)
        if best is None or n_pad < best[0]:
            best = (n_pad, t)
    return best[0], best[1], best[1]


# ------------------------------ Pallas kernels -------------------------------
def _gcn_layer1_kernel(a_ref, x_ref, w1_ref, b1_ref, w2_ref, o_ref, acc_ref):
    """acc += A[tile,kblk] @ (x[kblk] @ W1);  at last k: relu(+b1) @ W2 -> o.

    The x@W1 pre-transform is tiny (in_channels << 128) so recomputing it per
    row tile is negligible; the h1@W2 post-transform is applied once per node.
    """
    k = pl.program_id(1)

    @pl.when(k == 0)
    def _():
        acc_ref[...] = jnp.zeros_like(acc_ref)

    xw = jnp.dot(x_ref[...], w1_ref[...], preferred_element_type=jnp.float32)
    acc_ref[...] += jnp.dot(a_ref[...], xw.astype(jnp.bfloat16),
                            preferred_element_type=jnp.float32)

    @pl.when(k == pl.num_programs(1) - 1)
    def _():
        h1 = jnp.maximum(acc_ref[...] + b1_ref[...], 0.0)          # GCN1 + ReLU
        o_ref[...] = jnp.dot(h1.astype(jnp.bfloat16), w2_ref[...],  # = h1 @ W2
                             preferred_element_type=jnp.float32).astype(o_ref.dtype)


def _gcn_layer2_kernel(a_ref, r_ref, b2_ref, wh_ref, o_ref, acc_ref):
    """acc += A[tile,kblk] @ (h1@W2)[kblk];  at last k: (+b2) @ [Wmu|Wls] -> o."""
    k = pl.program_id(1)

    @pl.when(k == 0)
    def _():
        acc_ref[...] = jnp.zeros_like(acc_ref)

    acc_ref[...] += jnp.dot(a_ref[...], r_ref[...],
                            preferred_element_type=jnp.float32)

    @pl.when(k == pl.num_programs(1) - 1)
    def _():
        h2 = acc_ref[...] + b2_ref[...]                              # GCN2
        o_ref[...] = jnp.dot(h2.astype(jnp.bfloat16), wh_ref[...],   # = h2 @ Wheads
                             preferred_element_type=jnp.float32).astype(o_ref.dtype)


def _gcn_heads_kernel(a_ref, r_ref, bh_ref, eps_ref, o_ref, acc_ref, *,
                      out_c, pack_w):
    """Fused mu/log_std propagation + reparametrization.

    acc += A[tile,kblk] @ (h2@Wheads)[kblk]; at last k: heads = acc + [bmu|bls],
    z = mu + eps*exp(log_std), emit lane-dense slab [ z | mu | log_std | 0 ].
    """
    k = pl.program_id(1)

    @pl.when(k == 0)
    def _():
        acc_ref[...] = jnp.zeros_like(acc_ref)

    acc_ref[...] += jnp.dot(a_ref[...], r_ref[...],
                            preferred_element_type=jnp.float32)

    @pl.when(k == pl.num_programs(1) - 1)
    def _():
        heads = acc_ref[...] + bh_ref[...]
        mu = heads[:, :out_c]
        ls = heads[:, out_c:2 * out_c]
        z = mu + eps_ref[...] * jnp.exp(ls)          # exp -> EUP, hidden under MXU
        packed = jnp.concatenate([z, mu, ls], axis=-1)
        pad = pack_w - 3 * out_c
        if pad > 0:
            packed = jnp.concatenate(
                [packed, jnp.zeros((packed.shape[0], pad), jnp.float32)], axis=-1)
        o_ref[...] = packed


# ------------------------------- JAX wrappers ---------------------------------
def build_norm_adj(edge_index, num_nodes, n_pad):
    """Dense A_hat = D^{-1/2}(A+I)D^{-1/2}, zero-padded to n_pad, cast to bf16."""
    # TODO(synk): for large graphs replace this O(N^2) dense scatter build with
    # a sparse gather formulation (PrefetchScalarGridSpec over edge lists) and
    # reuse A_hat across forward calls instead of rebuilding it per call.
    src = edge_index[0]
    dst = edge_index[1]
    loop = jnp.arange(num_nodes, dtype=edge_index.dtype)
    src = jnp.concatenate([src, loop])
    dst = jnp.concatenate([dst, loop])
    A = jnp.zeros((num_nodes, num_nodes), jnp.float32).at[dst, src].add(1.0)
    deg = A.sum(axis=1)
    dinv = jnp.where(deg > 0, jax.lax.rsqrt(deg), 0.0)
    A = dinv[:, None] * A * dinv[None, :]
    pad = n_pad - num_nodes
    A = jnp.pad(A, ((0, pad), (0, pad)))
    return A.astype(jnp.bfloat16)


def _pad2(w, rows, cols):
    r, c = w.shape
    return jnp.pad(w, ((0, rows - r), (0, cols - c)))


def pack_params(params, in_channels, out_channels):
    """Zero-pad feature dims to 128 lanes, fuse mu|log_std heads, cast W to bf16."""
    hidden, latent = CONFIG["hidden"], CONFIG["latent"]
    hp = _round_up(hidden, LANE)
    lp = _round_up(latent, LANE)
    head_p = _round_up(2 * out_channels, LANE)
    w_heads = jnp.concatenate([params["wmu"], params["wls"]], axis=1)
    b_heads = jnp.concatenate([params["bmu"], params["bls"]], axis=1)
    return {
        "w1": _pad2(params["w1"], in_channels, hp).astype(jnp.bfloat16),
        "b1": _pad2(params["b1"], 1, hp),
        "w2": _pad2(params["w2"], hp, lp).astype(jnp.bfloat16),
        "b2": _pad2(params["b2"], 1, lp),
        "wh": _pad2(w_heads, lp, head_p).astype(jnp.bfloat16),
        "bh": _pad2(b_heads, 1, head_p),
    }


def _gcn_layer1(a, x, w1, b1, w2, *, n_pad, tm, tk):
    hp, lp = w1.shape[1], w2.shape[1]
    return pl.pallas_call(
        _gcn_layer1_kernel,
        out_shape=jax.ShapeDtypeStruct((n_pad, lp), jnp.bfloat16),
        grid_spec=pltpu.PrefetchScalarGridSpec(
            num_scalar_prefetch=0,
            grid=(n_pad // tm, n_pad // tk),
            in_specs=[
                pl.BlockSpec((tm, tk), lambda i, k: (i, k)),            # A tile
                pl.BlockSpec((tk, x.shape[1]), lambda i, k: (k, 0)),    # x rows
                pl.BlockSpec(w1.shape, lambda i, k: (0, 0)),            # resident
                pl.BlockSpec(b1.shape, lambda i, k: (0, 0)),
                pl.BlockSpec(w2.shape, lambda i, k: (0, 0)),
            ],
            out_specs=pl.BlockSpec((tm, lp), lambda i, k: (i, 0)),
            scratch_shapes=[pltpu.VMEM((tm, hp), jnp.float32)],
        ),
        compiler_params=_COMPILER_PARAMS,
    )(a, x, w1, b1, w2)


def _gcn_layer2(a, r, b2, wh, *, n_pad, tm, tk):
    lp, head_p = r.shape[1], wh.shape[1]
    return pl.pallas_call(
        _gcn_layer2_kernel,
        out_shape=jax.ShapeDtypeStruct((n_pad, head_p), jnp.bfloat16),
        grid_spec=pltpu.PrefetchScalarGridSpec(
            num_scalar_prefetch=0,
            grid=(n_pad // tm, n_pad // tk),
            in_specs=[
                pl.BlockSpec((tm, tk), lambda i, k: (i, k)),
                pl.BlockSpec((tk, lp), lambda i, k: (k, 0)),            # h1 @ W2
                pl.BlockSpec(b2.shape, lambda i, k: (0, 0)),
                pl.BlockSpec(wh.shape, lambda i, k: (0, 0)),
            ],
            out_specs=pl.BlockSpec((tm, head_p), lambda i, k: (i, 0)),
            scratch_shapes=[pltpu.VMEM((tm, lp), jnp.float32)],
        ),
        compiler_params=_COMPILER_PARAMS,
    )(a, r, b2, wh)


def _gcn_heads(a, r, bh, eps, *, n_pad, tm, tk, out_c, pack_w):
    head_p = r.shape[1]
    kern = functools.partial(_gcn_heads_kernel, out_c=out_c, pack_w=pack_w)
    return pl.pallas_call(
        kern,
        out_shape=jax.ShapeDtypeStruct((n_pad, pack_w), jnp.float32),
        grid_spec=pltpu.PrefetchScalarGridSpec(
            num_scalar_prefetch=0,
            grid=(n_pad // tm, n_pad // tk),
            in_specs=[
                pl.BlockSpec((tm, tk), lambda i, k: (i, k)),
                pl.BlockSpec((tk, head_p), lambda i, k: (k, 0)),        # h2 @ Wheads
                pl.BlockSpec(bh.shape, lambda i, k: (0, 0)),
                pl.BlockSpec((tm, eps.shape[1]), lambda i, k: (i, 0)),
            ],
            out_specs=pl.BlockSpec((tm, pack_w), lambda i, k: (i, 0)),
            scratch_shapes=[pltpu.VMEM((tm, head_p), jnp.float32)],
        ),
        compiler_params=_COMPILER_PARAMS,
    )(a, r, bh, eps)


def gvae_forward(params, x, edge_index, eps):
    N, in_c = x.shape
    out_c = params["wmu"].shape[1]
    n_pad, tm, tk = _choose_tiles(N)
    pack_w = _round_up(3 * out_c, LANE)

    A = build_norm_adj(edge_index, N, n_pad)
    xp = jnp.pad(x, ((0, n_pad - N), (0, 0))).astype(jnp.bfloat16)
    eps_p = jnp.pad(eps.astype(jnp.float32), ((0, n_pad - N), (0, 0)))
    p = pack_params(params, in_c, out_c)

    # encoder1: relu(A@(x W1)+b1), output already transformed by W2
    r1 = _gcn_layer1(A, xp, p["w1"], p["b1"], p["w2"], n_pad=n_pad, tm=tm, tk=tk)
    # encoder2: (A@(h1 W2)+b2), output already transformed by fused [Wmu|Wls]
    r2 = _gcn_layer2(A, r1, p["b2"], p["wh"], n_pad=n_pad, tm=tm, tk=tk)
    # fused mu/log_std propagation + reparametrization, lane-packed output
    packed = _gcn_heads(A, r2, p["bh"], eps_p, n_pad=n_pad, tm=tm, tk=tk,
                        out_c=out_c, pack_w=pack_w)

    z = packed[:N, 0:out_c]
    mu = packed[:N, out_c:2 * out_c]
    log_std = packed[:N, 2 * out_c:3 * out_c]
    return z, mu, log_std


def init_params(key, in_channels, out_channels):
    hidden, latent = CONFIG["hidden"], CONFIG["latent"]
    ks = jax.random.split(key, 4)

    def glorot(k, fan_in, fan_out):
        scale = jnp.sqrt(6.0 / (fan_in + fan_out))
        return jax.random.uniform(k, (fan_in, fan_out), jnp.float32, -scale, scale)

    return {
        "w1": glorot(ks[0], in_channels, hidden),
        "b1": jnp.zeros((1, hidden), jnp.float32),
        "w2": glorot(ks[1], hidden, latent),
        "b2": jnp.zeros((1, latent), jnp.float32),
        "wmu": glorot(ks[2], latent, out_channels),
        "bmu": jnp.zeros((1, out_channels), jnp.float32),
        "wls": glorot(ks[3], latent, out_channels),
        "bls": jnp.zeros((1, out_channels), jnp.float32),
    }


if __name__ == "__main__":
    key = jax.random.PRNGKey(0)
    k_param, k_x, k_edge, k_eps = jax.random.split(key, 4)

    N = 16            # nodes
    IN_C = 4          # in_channels
    OUT_C = 8         # out_channels
    E = 24            # edges

    params = init_params(k_param, IN_C, OUT_C)
    x = jax.random.normal(k_x, (N, IN_C), jnp.float32)
    edge_index = jax.random.randint(k_edge, (2, E), 0, N, jnp.int32)
    eps = jax.random.normal(k_eps, (N, OUT_C), jnp.float32)  # randn_like(std)

    z, mu, log_std = jax.jit(gvae_forward)(params, x, edge_index, eps)
    jax.block_until_ready((z, mu, log_std))

    assert z.shape == (N, OUT_C) and mu.shape == (N, OUT_C) and log_std.shape == (N, OUT_C)
    assert jnp.all(jnp.isfinite(z)) and jnp.all(jnp.isfinite(mu)) and jnp.all(jnp.isfinite(log_std))
    print("KERNEL_OK")
</pallas_src>

<mosaic_0001>
module attributes {stable_mosaic.version = 11 : i64} {
  func.func private @main(%arg0: i32) attributes {dimension_semantics = [#tpu.dimension_semantics<core_parallel>], iteration_bounds = array<i64: 2>, tpu.core_type = #tpu.core_type<sc_scalar_subcore>, window_params = []} {
    return
  }
}

module attributes {stable_mosaic.version = 11 : i64} {
  func.func private @main(%arg0: i32) attributes {dimension_semantics = [#tpu.dimension_semantics<core_parallel>], iteration_bounds = array<i64: 2>, tpu.core_type = #tpu.core_type<sc_scalar_subcore>, window_params = []} {
    return
  }
}

module attributes {stable_mosaic.version = 11 : i64} {
  func.func @_gcn_layer1_kernel(%arg0: i32, %arg1: i32, %arg2: memref<16x16xbf16, #tpu.memory_space<vmem>>, %arg3: memref<16x4xbf16, #tpu.memory_space<vmem>>, %arg4: memref<4x128xbf16, #tpu.memory_space<vmem>>, %arg5: memref<1x128xf32, #tpu.memory_space<vmem>>, %arg6: memref<128x128xbf16, #tpu.memory_space<vmem>>, %arg7: memref<16x128xbf16, #tpu.memory_space<vmem>>, %arg8: memref<16x128xf32, #tpu.memory_space<vmem>>) attributes {dimension_semantics = [#tpu.dimension_semantics<parallel>, #tpu.dimension_semantics<arbitrary>], iteration_bounds = array<i64: 1, 1>, scalar_prefetch = 0 : i64, scratch_operands = 1 : i64, tpu.core_type = #tpu.core_type<tc>, window_params = [{transform_indices = @transform_0, window_bounds = array<i64: 16, 16>}, {transform_indices = @transform_1, window_bounds = array<i64: 16, 4>}, {pipeline_mode = #tpu.pipeline_mode<synchronous>, transform_indices = @transform_2, window_bounds = array<i64: 4, 128>}, {pipeline_mode = #tpu.pipeline_mode<synchronous>, transform_indices = @transform_3, window_bounds = array<i64: 1, 128>}, {pipeline_mode = #tpu.pipeline_mode<synchronous>, transform_indices = @transform_4, window_bounds = array<i64: 128, 128>}, {transform_indices = @transform_5, window_bounds = array<i64: 16, 128>}]} {
    %c0_i32 = arith.constant 0 : i32
    %0 = arith.cmpi eq, %arg1, %c0_i32 : i32
    %1 = arith.extui %0 : i1 to i32
    %c0_i32_0 = arith.constant 0 : i32
    %2 = arith.cmpi ne, %1, %c0_i32_0 : i32
    scf.if %2 {
      %cst_13 = arith.constant 0.000000e+00 : f32
      %15 = vector.broadcast %cst_13 : f32 to vector<16x128xf32>
      %c0_14 = arith.constant 0 : index
      %c0_15 = arith.constant 0 : index
      %16 = vector.load %arg8[%c0_14, %c0_15] : memref<16x128xf32, #tpu.memory_space<vmem>>, vector<16x128xf32>
      tpu.vector_store %arg8[%c0_14, %c0_15], %15 {strides = array<i32>} : memref<16x128xf32, #tpu.memory_space<vmem>>, vector<16x128xf32>,
    } else {
    }
    %c0 = arith.constant 0 : index
    %c0_1 = arith.constant 0 : index
    %3 = vector.load %arg3[%c0, %c0_1] : memref<16x4xbf16, #tpu.memory_space<vmem>>, vector<16x4xbf16>
    %c0_2 = arith.constant 0 : index
    %c0_3 = arith.constant 0 : index
    %4 = vector.load %arg4[%c0_2, %c0_3] : memref<4x128xbf16, #tpu.memory_space<vmem>>, vector<4x128xbf16>
    %cst = arith.constant dense<0.000000e+00> : vector<16x128xf32>
    %5 = tpu.matmul %3, %4, %cst {dimension_numbers = #tpu.dot_dimension_numbers<[1], [0], [0], [1], [0, 0, 1, 1], [], []>} : vector<16x4xbf16>, vector<4x128xbf16>, vector<16x128xf32> -> vector<16x128xf32>
    %c0_4 = arith.constant 0 : index
    %c0_5 = arith.constant 0 : index
    %6 = vector.load %arg8[%c0_4, %c0_5] : memref<16x128xf32, #tpu.memory_space<vmem>>, vector<16x128xf32>
    %c0_6 = arith.constant 0 : index
    %c0_7 = arith.constant 0 : index
    %7 = vector.load %arg2[%c0_6, %c0_7] : memref<16x16xbf16, #tpu.memory_space<vmem>>, vector<16x16xbf16>
    %8 = arith.truncf %5 : vector<16x128xf32> to vector<16x128xbf16>
    %cst_8 = arith.constant dense<0.000000e+00> : vector<16x128xf32>
    %9 = tpu.matmul %7, %8, %cst_8 {dimension_numbers = #tpu.dot_dimension_numbers<[1], [0], [0], [1], [0, 0, 1, 1], [], []>} : vector<16x16xbf16>, vector<16x128xbf16>, vector<16x128xf32> -> vector<16x128xf32>
    %10 = arith.addf %6, %9 : vector<16x128xf32>
    %c0_9 = arith.constant 0 : index
    %c0_10 = arith.constant 0 : index
    %11 = vector.load %arg8[%c0_9, %c0_10] : memref<16x128xf32, #tpu.memory_space<vmem>>, vector<16x128xf32>
    tpu.vector_store %arg8[%c0_9, %c0_10], %10 {strides = array<i32>} : memref<16x128xf32, #tpu.memory_space<vmem>>, vector<16x128xf32>,
    %c0_i32_11 = arith.constant 0 : i32
    %12 = arith.cmpi eq, %arg1, %c0_i32_11 : i32
    %13 = arith.extui %12 : i1 to i32
    %c0_i32_12 = arith.constant 0 : i32
    %14 = arith.cmpi ne, %13, %c0_i32_12 : i32
    scf.if %14 {
      %c0_13 = arith.constant 0 : index
      %c0_14 = arith.constant 0 : index
      %15 = vector.load %arg8[%c0_13, %c0_14] : memref<16x128xf32, #tpu.memory_space<vmem>>, vector<16x128xf32>
      %c0_15 = arith.constant 0 : index
      %c0_16 = arith.constant 0 : index
      %16 = vector.load %arg5[%c0_15, %c0_16] : memref<1x128xf32, #tpu.memory_space<vmem>>, vector<1x128xf32>
      %17 = vector.broadcast %16 : vector<1x128xf32> to vector<16x128xf32>
      %18 = arith.addf %15, %17 : vector<16x128xf32>
      %cst_17 = arith.constant 0.000000e+00 : f32
      %19 = vector.broadcast %cst_17 : f32 to vector<16x128xf32>
      %20 = arith.maximumf %18, %19 : vector<16x128xf32>
      %21 = arith.truncf %20 : vector<16x128xf32> to vector<16x128xbf16>
      %c0_18 = arith.constant 0 : index
      %c0_19 = arith.constant 0 : index
      %22 = vector.load %arg6[%c0_18, %c0_19] : memref<128x128xbf16, #tpu.memory_space<vmem>>, vector<128x128xbf16>
      %cst_20 = arith.constant dense<0.000000e+00> : vector<16x128xf32>
      %23 = tpu.matmul %21, %22, %cst_20 {dimension_numbers = #tpu.dot_dimension_numbers<[1], [0], [0], [1], [0, 0, 1, 1], [], []>} : vector<16x128xbf16>, vector<128x128xbf16>, vector<16x128xf32> -> vector<16x128xf32>
      %24 = arith.truncf %23 : vector<16x128xf32> to vector<16x128xbf16>
      %c0_21 = arith.constant 0 : index
      %c0_22 = arith.constant 0 : index
      %25 = vector.load %arg7[%c0_21, %c0_22] : memref<16x128xbf16, #tpu.memory_space<vmem>>, vector<16x128xbf16>
      tpu.vector_store %arg7[%c0_21, %c0_22], %24 {strides = array<i32>} : memref<16x128xbf16, #tpu.memory_space<vmem>>, vector<16x128xbf16>,
    } else {
    }
    return
  }
  func.func @transform_0(%arg0: i32, %arg1: i32) -> (i32, i32) {
    %c0_i32 = arith.constant 0 : i32
    return %arg0, %arg1 : i32, i32
  }
  func.func @transform_1(%arg0: i32, %arg1: i32) -> (i32, i32) {
    %c0_i32 = arith.constant 0 : i32
    %c0_i32_0 = arith.constant 0 : i32
    return %arg1, %c0_i32 : i32, i32
  }
  func.func @transform_2(%arg0: i32, %arg1: i32) -> (i32, i32) {
    %c0_i32 = arith.constant 0 : i32
    %c0_i32_0 = arith.constant 0 : i32
    %c0_i32_1 = arith.constant 0 : i32
    return %c0_i32, %c0_i32_0 : i32, i32
  }
  func.func @transform_3(%arg0: i32, %arg1: i32) -> (i32, i32) {
    %c0_i32 = arith.constant 0 : i32
    %c0_i32_0 = arith.constant 0 : i32
    %c0_i32_1 = arith.constant 0 : i32
    return %c0_i32, %c0_i32_0 : i32, i32
  }
  func.func @transform_4(%arg0: i32, %arg1: i32) -> (i32, i32) {
    %c0_i32 = arith.constant 0 : i32
    %c0_i32_0 = arith.constant 0 : i32
    %c0_i32_1 = arith.constant 0 : i32
    return %c0_i32, %c0_i32_0 : i32, i32
  }
  func.func @transform_5(%arg0: i32, %arg1: i32) -> (i32, i32) {
    %c0_i32 = arith.constant 0 : i32
    %c0_i32_0 = arith.constant 0 : i32
    return %arg0, %c0_i32 : i32, i32
  }
}

module attributes {stable_mosaic.version = 11 : i64} {
  func.func @_gcn_layer2_kernel(%arg0: i32, %arg1: i32, %arg2: memref<16x16xbf16, #tpu.memory_space<vmem>>, %arg3: memref<16x128xbf16, #tpu.memory_space<vmem>>, %arg4: memref<1x128xf32, #tpu.memory_space<vmem>>, %arg5: memref<128x128xbf16, #tpu.memory_space<vmem>>, %arg6: memref<16x128xbf16, #tpu.memory_space<vmem>>, %arg7: memref<16x128xf32, #tpu.memory_space<vmem>>) attributes {dimension_semantics = [#tpu.dimension_semantics<parallel>, #tpu.dimension_semantics<arbitrary>], iteration_bounds = array<i64: 1, 1>, scalar_prefetch = 0 : i64, scratch_operands = 1 : i64, tpu.core_type = #tpu.core_type<tc>, window_params = [{transform_indices = @transform_0, window_bounds = array<i64: 16, 16>}, {transform_indices = @transform_1, window_bounds = array<i64: 16, 128>}, {pipeline_mode = #tpu.pipeline_mode<synchronous>, transform_indices = @transform_2, window_bounds = array<i64: 1, 128>}, {pipeline_mode = #tpu.pipeline_mode<synchronous>, transform_indices = @transform_3, window_bounds = array<i64: 128, 128>}, {transform_indices = @transform_4, window_bounds = array<i64: 16, 128>}]} {
    %c0_i32 = arith.constant 0 : i32
    %0 = arith.cmpi eq, %arg1, %c0_i32 : i32
    %1 = arith.extui %0 : i1 to i32
    %c0_i32_0 = arith.constant 0 : i32
    %2 = arith.cmpi ne, %1, %c0_i32_0 : i32
    scf.if %2 {
      %cst_10 = arith.constant 0.000000e+00 : f32
      %12 = vector.broadcast %cst_10 : f32 to vector<16x128xf32>
      %c0_11 = arith.constant 0 : index
      %c0_12 = arith.constant 0 : index
      %13 = vector.load %arg7[%c0_11, %c0_12] : memref<16x128xf32, #tpu.memory_space<vmem>>, vector<16x128xf32>
      tpu.vector_store %arg7[%c0_11, %c0_12], %12 {strides = array<i32>} : memref<16x128xf32, #tpu.memory_space<vmem>>, vector<16x128xf32>,
    } else {
    }
    %c0 = arith.constant 0 : index
    %c0_1 = arith.constant 0 : index
    %3 = vector.load %arg7[%c0, %c0_1] : memref<16x128xf32, #tpu.memory_space<vmem>>, vector<16x128xf32>
    %c0_2 = arith.constant 0 : index
    %c0_3 = arith.constant 0 : index
    %4 = vector.load %arg2[%c0_2, %c0_3] : memref<16x16xbf16, #tpu.memory_space<vmem>>, vector<16x16xbf16>
    %c0_4 = arith.constant 0 : index
    %c0_5 = arith.constant 0 : index
    %5 = vector.load %arg3[%c0_4, %c0_5] : memref<16x128xbf16, #tpu.memory_space<vmem>>, vector<16x128xbf16>
    %cst = arith.constant dense<0.000000e+00> : vector<16x128xf32>
    %6 = tpu.matmul %4, %5, %cst {dimension_numbers = #tpu.dot_dimension_numbers<[1], [0], [0], [1], [0, 0, 1, 1], [], []>} : vector<16x16xbf16>, vector<16x128xbf16>, vector<16x128xf32> -> vector<16x128xf32>
    %7 = arith.addf %3, %6 : vector<16x128xf32>
    %c0_6 = arith.constant 0 : index
    %c0_7 = arith.constant 0 : index
    %8 = vector.load %arg7[%c0_6, %c0_7] : memref<16x128xf32, #tpu.memory_space<vmem>>, vector<16x128xf32>
    tpu.vector_store %arg7[%c0_6, %c0_7], %7 {strides = array<i32>} : memref<16x128xf32, #tpu.memory_space<vmem>>, vector<16x128xf32>,
    %c0_i32_8 = arith.constant 0 : i32
    %9 = arith.cmpi eq, %arg1, %c0_i32_8 : i32
    %10 = arith.extui %9 : i1 to i32
    %c0_i32_9 = arith.constant 0 : i32
    %11 = arith.cmpi ne, %10, %c0_i32_9 : i32
    scf.if %11 {
      %c0_10 = arith.constant 0 : index
      %c0_11 = arith.constant 0 : index
      %12 = vector.load %arg7[%c0_10, %c0_11] : memref<16x128xf32, #tpu.memory_space<vmem>>, vector<16x128xf32>
      %c0_12 = arith.constant 0 : index
      %c0_13 = arith.constant 0 : index
      %13 = vector.load %arg4[%c0_12, %c0_13] : memref<1x128xf32, #tpu.memory_space<vmem>>, vector<1x128xf32>
      %14 = vector.broadcast %13 : vector<1x128xf32> to vector<16x128xf32>
      %15 = arith.addf %12, %14 : vector<16x128xf32>
      %16 = arith.truncf %15 : vector<16x128xf32> to vector<16x128xbf16>
      %c0_14 = arith.constant 0 : index
      %c0_15 = arith.constant 0 : index
      %17 = vector.load %arg5[%c0_14, %c0_15] : memref<128x128xbf16, #tpu.memory_space<vmem>>, vector<128x128xbf16>
      %cst_16 = arith.constant dense<0.000000e+00> : vector<16x128xf32>
      %18 = tpu.matmul %16, %17, %cst_16 {dimension_numbers = #tpu.dot_dimension_numbers<[1], [0], [0], [1], [0, 0, 1, 1], [], []>} : vector<16x128xbf16>, vector<128x128xbf16>, vector<16x128xf32> -> vector<16x128xf32>
      %19 = arith.truncf %18 : vector<16x128xf32> to vector<16x128xbf16>
      %c0_17 = arith.constant 0 : index
      %c0_18 = arith.constant 0 : index
      %20 = vector.load %arg6[%c0_17, %c0_18] : memref<16x128xbf16, #tpu.memory_space<vmem>>, vector<16x128xbf16>
      tpu.vector_store %arg6[%c0_17, %c0_18], %19 {strides = array<i32>} : memref<16x128xbf16, #tpu.memory_space<vmem>>, vector<16x128xbf16>,
    } else {
    }
    return
  }
  func.func @transform_0(%arg0: i32, %arg1: i32) -> (i32, i32) {
    %c0_i32 = arith.constant 0 : i32
    return %arg0, %arg1 : i32, i32
  }
  func.func @transform_1(%arg0: i32, %arg1: i32) -> (i32, i32) {
    %c0_i32 = arith.constant 0 : i32
    %c0_i32_0 = arith.constant 0 : i32
    return %arg1, %c0_i32 : i32, i32
  }
  func.func @transform_2(%arg0: i32, %arg1: i32) -> (i32, i32) {
    %c0_i32 = arith.constant 0 : i32
    %c0_i32_0 = arith.constant 0 : i32
    %c0_i32_1 = arith.constant 0 : i32
    return %c0_i32, %c0_i32_0 : i32, i32
  }
  func.func @transform_3(%arg0: i32, %arg1: i32) -> (i32, i32) {
    %c0_i32 = arith.constant 0 : i32
    %c0_i32_0 = arith.constant 0 : i32
    %c0_i32_1 = arith.constant 0 : i32
    return %c0_i32, %c0_i32_0 : i32, i32
  }
  func.func @transform_4(%arg0: i32, %arg1: i32) -> (i32, i32) {
    %c0_i32 = arith.constant 0 : i32
    %c0_i32_0 = arith.constant 0 : i32
    return %arg0, %c0_i32 : i32, i32
  }
}

module attributes {stable_mosaic.version = 11 : i64} {
  func.func @_gcn_heads_kernel(%arg0: i32, %arg1: i32, %arg2: memref<16x16xbf16, #tpu.memory_space<vmem>>, %arg3: memref<16x128xbf16, #tpu.memory_space<vmem>>, %arg4: memref<1x128xf32, #tpu.memory_space<vmem>>, %arg5: memref<16x8xf32, #tpu.memory_space<vmem>>, %arg6: memref<16x128xf32, #tpu.memory_space<vmem>>, %arg7: memref<16x128xf32, #tpu.memory_space<vmem>>) attributes {dimension_semantics = [#tpu.dimension_semantics<parallel>, #tpu.dimension_semantics<arbitrary>], iteration_bounds = array<i64: 1, 1>, scalar_prefetch = 0 : i64, scratch_operands = 1 : i64, tpu.core_type = #tpu.core_type<tc>, window_params = [{transform_indices = @transform_0, window_bounds = array<i64: 16, 16>}, {transform_indices = @transform_1, window_bounds = array<i64: 16, 128>}, {pipeline_mode = #tpu.pipeline_mode<synchronous>, transform_indices = @transform_2, window_bounds = array<i64: 1, 128>}, {transform_indices = @transform_3, window_bounds = array<i64: 16, 8>}, {transform_indices = @transform_4, window_bounds = array<i64: 16, 128>}]} {
    %c0_i32 = arith.constant 0 : i32
    %0 = arith.cmpi eq, %arg1, %c0_i32 : i32
    %1 = arith.extui %0 : i1 to i32
    %c0_i32_0 = arith.constant 0 : i32
    %2 = arith.cmpi ne, %1, %c0_i32_0 : i32
    scf.if %2 {
      %cst_10 = arith.constant 0.000000e+00 : f32
      %12 = vector.broadcast %cst_10 : f32 to vector<16x128xf32>
      %c0_11 = arith.constant 0 : index
      %c0_12 = arith.constant 0 : index
      %13 = vector.load %arg7[%c0_11, %c0_12] : memref<16x128xf32, #tpu.memory_space<vmem>>, vector<16x128xf32>
      tpu.vector_store %arg7[%c0_11, %c0_12], %12 {strides = array<i32>} : memref<16x128xf32, #tpu.memory_space<vmem>>, vector<16x128xf32>,
    } else {
    }
    %c0 = arith.constant 0 : index
    %c0_1 = arith.constant 0 : index
    %3 = vector.load %arg7[%c0, %c0_1] : memref<16x128xf32, #tpu.memory_space<vmem>>, vector<16x128xf32>
    %c0_2 = arith.constant 0 : index
    %c0_3 = arith.constant 0 : index
    %4 = vector.load %arg2[%c0_2, %c0_3] : memref<16x16xbf16, #tpu.memory_space<vmem>>, vector<16x16xbf16>
    %c0_4 = arith.constant 0 : index
    %c0_5 = arith.constant 0 : index
    %5 = vector.load %arg3[%c0_4, %c0_5] : memref<16x128xbf16, #tpu.memory_space<vmem>>, vector<16x128xbf16>
    %cst = arith.constant dense<0.000000e+00> : vector<16x128xf32>
    %6 = tpu.matmul %4, %5, %cst {dimension_numbers = #tpu.dot_dimension_numbers<[1], [0], [0], [1], [0, 0, 1, 1], [], []>} : vector<16x16xbf16>, vector<16x128xbf16>, vector<16x128xf32> -> vector<16x128xf32>
    %7 = arith.addf %3, %6 : vector<16x128xf32>
    %c0_6 = arith.constant 0 : index
    %c0_7 = arith.constant 0 : index
    %8 = vector.load %arg7[%c0_6, %c0_7] : memref<16x128xf32, #tpu.memory_space<vmem>>, vector<16x128xf32>
    tpu.vector_store %arg7[%c0_6, %c0_7], %7 {strides = array<i32>} : memref<16x128xf32, #tpu.memory_space<vmem>>, vector<16x128xf32>,
    %c0_i32_8 = arith.constant 0 : i32
    %9 = arith.cmpi eq, %arg1, %c0_i32_8 : i32
    %10 = arith.extui %9 : i1 to i32
    %c0_i32_9 = arith.constant 0 : i32
    %11 = arith.cmpi ne, %10, %c0_i32_9 : i32
    scf.if %11 {
      %c0_10 = arith.constant 0 : index
      %c0_11 = arith.constant 0 : index
      %12 = vector.load %arg7[%c0_10, %c0_11] : memref<16x128xf32, #tpu.memory_space<vmem>>, vector<16x128xf32>
      %c0_12 = arith.constant 0 : index
      %c0_13 = arith.constant 0 : index
      %13 = vector.load %arg4[%c0_12, %c0_13] : memref<1x128xf32, #tpu.memory_space<vmem>>, vector<1x128xf32>
      %14 = vector.broadcast %13 : vector<1x128xf32> to vector<16x128xf32>
      %15 = arith.addf %12, %14 : vector<16x128xf32>
      %16 = vector.extract_strided_slice %15 {offsets = [0, 0], sizes = [16, 8], strides = [1, 1]} : vector<16x128xf32> to vector<16x8xf32>
      %17 = vector.extract_strided_slice %15 {offsets = [0, 8], sizes = [16, 8], strides = [1, 1]} : vector<16x128xf32> to vector<16x8xf32>
      %c0_14 = arith.constant 0 : index
      %c0_15 = arith.constant 0 : index
      %18 = vector.load %arg5[%c0_14, %c0_15] : memref<16x8xf32, #tpu.memory_space<vmem>>, vector<16x8xf32>
      %19 = math.exp %17 : vector<16x8xf32>
      %20 = arith.mulf %18, %19 : vector<16x8xf32>
      %21 = arith.addf %16, %20 : vector<16x8xf32>
      %22 = tpu.concatenate %21, %16, %17 in 1 : vector<16x8xf32>, vector<16x8xf32>, vector<16x8xf32> -> vector<16x24xf32>
      %cst_16 = arith.constant 0.000000e+00 : f32
      %23 = vector.broadcast %cst_16 : f32 to vector<16x104xf32>
      %24 = tpu.concatenate %22, %23 in 1 : vector<16x24xf32>, vector<16x104xf32> -> vector<16x128xf32>
      %c0_17 = arith.constant 0 : index
      %c0_18 = arith.constant 0 : index
      %25 = vector.load %arg6[%c0_17, %c0_18] : memref<16x128xf32, #tpu.memory_space<vmem>>, vector<16x128xf32>
      tpu.vector_store %arg6[%c0_17, %c0_18], %24 {strides = array<i32>} : memref<16x128xf32, #tpu.memory_space<vmem>>, vector<16x128xf32>,
    } else {
    }
    return
  }
  func.func @transform_0(%arg0: i32, %arg1: i32) -> (i32, i32) {
    %c0_i32 = arith.constant 0 : i32
    return %arg0, %arg1 : i32, i32
  }
  func.func @transform_1(%arg0: i32, %arg1: i32) -> (i32, i32) {
    %c0_i32 = arith.constant 0 : i32
    %c0_i32_0 = arith.constant 0 : i32
    return %arg1, %c0_i32 : i32, i32
  }
  func.func @transform_2(%arg0: i32, %arg1: i32) -> (i32, i32) {
    %c0_i32 = arith.constant 0 : i32
    %c0_i32_0 = arith.constant 0 : i32
    %c0_i32_1 = arith.constant 0 : i32
    return %c0_i32, %c0_i32_0 : i32, i32
  }
  func.func @transform_3(%arg0: i32, %arg1: i32) -> (i32, i32) {
    %c0_i32 = arith.constant 0 : i32
    %c0_i32_0 = arith.constant 0 : i32
    return %arg0, %c0_i32 : i32, i32
  }
  func.func @transform_4(%arg0: i32, %arg1: i32) -> (i32, i32) {
    %c0_i32 = arith.constant 0 : i32
    %c0_i32_0 = arith.constant 0 : i32
    return %arg0, %c0_i32 : i32, i32
  }
}

</mosaic_0001>

<llo_original>
// kernel: gvae_forward.5
$region0: #{gvae_forward.5}
  #allocation0 [shape = 'u32[]', space=smem, size = 0x4, offset = 0x4, fixed_abs, tag = 'smem constant byte address 0x4 - core index']
  #allocation1 [shape = 'u32[144,128]{1,0:T(1,128)}', space=vmem, size = 0x12000, scoped, tag = 'internal scratch']
  #allocation2 [shape = 'f32[16,128]{1,0:T(8,128)}', space=vmem, size = 0x2000, scoped, tag = 'scratch operand']
  %s0 = inlined_call_operand.vmem [shape: bf16[16,16], index: 0, kind: input, shape index: {}]
  %s1 = inlined_call_operand.vmem [shape: bf16[16,128], index: 1, kind: input, shape index: {}]
  %s2 = inlined_call_operand.vmem [shape: f32[1,128], index: 2, kind: input, shape index: {}]
  %s3 = inlined_call_operand.vmem [shape: f32[16,8], index: 3, kind: input, shape index: {}]
  %s4 = inlined_call_operand.vmem [shape: f32[16,128], index: 4, kind: output, shape index: {}]
  %s5 = sld [smem:[#allocation0]]
  $region34: #{gvae_forward.5} parent=0
    _
  %s7 = ssub.s32 1, %s5
  %s8 = scalar_select 0, %s7, %s5
  // Predicated region
  $region2: #{gvae_forward.5} parent=0 // pred_check
    _
  $region3: #{gvae_forward.5} parent=0 // pred_check_branch
    %10 = sbr.rel (0) target = $region5
  $region4: #{gvae_forward.5} parent=0 // pred_region
    _
  $region5: #{gvae_forward.5} parent=0 // pred_fallthru
    _
  // Predicated region
  $region6: #{gvae_forward.5} parent=0 // pred_check
    _
  $region7: #{gvae_forward.5} parent=0 // pred_check_branch
    %12 = sbr.rel (0) target = $region9
  $region8: #{gvae_forward.5} parent=0 // pred_region
    _
  $region9: #{gvae_forward.5} parent=0 // pred_fallthru
    _
  // Predicated region
  $region10: #{gvae_forward.5} parent=0 // pred_check
    _
  $region11: #{gvae_forward.5} parent=0 // pred_check_branch
    %14 = sbr.rel (0) target = $region13
  $region12: #{gvae_forward.5} parent=0 // pred_region
    _
  $region13: #{gvae_forward.5} parent=0 // pred_fallthru
    _
  // Predicated region
  $region14: #{gvae_forward.5} parent=0 // pred_check
    _
  $region15: #{gvae_forward.5} parent=0 // pred_check_branch
    %16 = sbr.rel (0) target = $region17
  $region16: #{gvae_forward.5} parent=0 // pred_region
    _
  $region17: #{gvae_forward.5} parent=0 // pred_fallthru
    _
  %p18 = scmp.eq.s32.totalorder 0, 0
  // Predicated region
  $region18: #{gvae_forward.5} parent=0 // pred_check
    %p19 = pneg %p18
  $region19: #{gvae_forward.5} parent=0 // pred_check_branch
    %21 = sbr.rel (%p19) target = $region21
  $region20: #{gvae_forward.5} parent=0 // pred_region
    %22 = vst [vmem:[#allocation2] sm:$0xff] 0.0
    %23 = vst [vmem:[#allocation2 + $0x8] sm:$0xff] 0.0
  $region21: #{gvae_forward.5} parent=0 // pred_fallthru
    _
  %v24 = vld [vmem:[#allocation2] sm:$0xff]
  %v25 = vld [vmem:[#allocation2 + $0x8] sm:$0xff]
  %v26 = vld [vmem:[%s0] sm:$0xf]
  %v27 = vld [vmem:[%s0 + $0x4] sm:$0xf]
  %v28 = vld [vmem:[%s1] sm:$0xf]
  %v29 = vld [vmem:[%s1 + $0x4] sm:$0xf]
  %v32 = vunpack.c.l.b16 %v26
  %v33 = vunpack.c.l.b16 %v27
  %v34 = vpack.c.b16 %v33, %v32
  %v37 = vunpack.c.l.b16 %v28
  %v38 = vunpack.c.l.b16 %v29
  %v39 = vpack.c.b16 %v38, %v37
  %vm41 = vcmask 130048
  %v43 = vsel %vm41, %v34, 0
  %45 = vmatprep.subr.bf16.mxu0 0
  %46 = vmatpush1.bf16.msra.mxu0 0
  %47 = vmatprep.subr.bf16.mxu0 0
  %48 = vmatpush1.bf16.msra.mxu0 0
  %49 = vmatprep.subr.bf16.mxu0 0
  %50 = vmatpush1.bf16.msra.mxu0 0
  %51 = vmatprep.subr.bf16.mxu0 0
  %52 = vmatpush1.bf16.msra.mxu0 0
  %53 = vmatprep.subr.bf16.mxu0 0
  %54 = vmatpush1.bf16.msra.mxu0 0
  %55 = vmatprep.subr.bf16.mxu0 0
  %56 = vmatpush1.bf16.msra.mxu0 0
  %57 = vmatprep.subr.bf16.mxu0 0
  %58 = vmatpush1.bf16.msra.mxu0 0
  %59 = vmatprep.subr.bf16.mxu0 0
  %60 = vmatpush1.bf16.msra.mxu0 %v39
  %61 = vmatprep.subr.bf16.mxu0 0
  %62 = vmatpush2.bf16.msra.mxu0 0
  %63 = vmatprep.subr.bf16.mxu0 0
  %64 = vmatpush2.bf16.msra.mxu0 0
  %65 = vmatprep.subr.bf16.mxu0 0
  %66 = vmatpush2.bf16.msra.mxu0 0
  %67 = vmatprep.subr.bf16.mxu0 0
  %68 = vmatpush2.bf16.msra.mxu0 0
  %69 = vmatprep.subr.bf16.mxu0 0
  %70 = vmatpush2.bf16.msra.mxu0 0
  %71 = vmatprep.subr.bf16.mxu0 0
  %72 = vmatpush2.bf16.msra.mxu0 0
  %73 = vmatprep.subr.bf16.mxu0 0
  %74 = vmatpush2.bf16.msra.mxu0 0
  %75 = vmatprep.subr.bf16.mxu0 0
  %76 = vmatpush2.bf16.msra.mxu0 0
  %77 = vmatprep.mubr.bf16.mxu0 0
  %78 = vmatmul.mubr.bf16.gmra.mxu0 %v43
  %v79 = vpop.f32.mrf.mxu0
  %v80 = vadd.f32 0.0, %v79
  %v81 = vpop.f32.mrf.mxu0
  %v82 = vpop.f32.mrf.mxu0
  %v83 = vadd.f32 0.0, %v82
  %v84 = vpop.f32.mrf.mxu0
  %85 = vdwg.mxu0
  %v86 = vadd.f32 %v24, %v80
  %v87 = vadd.f32 %v25, %v83
  %88 = vst [vmem:[#allocation2] sm:$0xff] %v86
  %89 = vst [vmem:[#allocation2 + $0x8] sm:$0xff] %v87
  // Predicated region
  $region22: #{gvae_forward.5} parent=0 // pred_check
    %p90 = pneg %p18
  $region23: #{gvae_forward.5} parent=0 // pred_check_branch
    %92 = sbr.rel (%p90) target = $region25
  $region24: #{gvae_forward.5} parent=0 // pred_region
    %v93 = vld [vmem:[#allocation2] sm:$0xff]
    %v94 = vld [vmem:[#allocation2 + $0x8] sm:$0xff]
    %v95 = vld [vmem:[%s2] sm:$0x1]
    %v97 = vlaneseq
    %v98 = vshrl.u32 %v97, 7
    %v99 = vsub.s32 0, %v98
    %v100 = vrot.slane %v95, %v99
    %v102 = vadd.f32 %v93, %v100
    %v103 = vadd.f32 %v94, %v100
    %v104 = vld [vmem:[%s3] sm:$0xff]
    %v105 = vld [vmem:[%s3 + $0x8] sm:$0xff]
    %v106 = vmul.f32 %v102, 1.442695
    %v107 = vpow.pop %v106
    %v108 = vmul.f32 %v103, 1.442695
    %v109 = vpow.pop %v108
    %112 = vrot.lane.b32.xlu0 %v107, 120
    %v113 = vpop.permute.xlu0 %112
    %114 = vrot.lane.b32.xlu0 %v109, 120
    %v115 = vpop.permute.xlu0 %114
    %v118 = vmul.f32 %v104, %v113
    %v119 = vmul.f32 %v105, %v115
    %v120 = vadd.f32 %v102, %v118
    %v121 = vadd.f32 %v103, %v119
    %124 = vrot.lane.b32.xlu0 %v102, 8
    %v125 = vpop.permute.xlu0 %124
    %126 = vrot.lane.b32.xlu0 %v103, 8
    %v127 = vpop.permute.xlu0 %126
    %vm130 = vcmask 64512
    %v131 = vsel %vm130, %v120, %v125
    %v132 = vsel %vm130, %v121, %v127
    %v133 = vsel %vm41, %v131, %v125
    %v134 = vsel %vm41, %v132, %v127
    %vm135 = vcmask 195584
    %v136 = vsel %vm135, %v133, 0.0
    %v137 = vsel %vm135, %v134, 0.0
    %138 = vst [vmem:[%s4] sm:$0xff] %v136
    %139 = vst [vmem:[%s4 + $0x8] sm:$0xff] %v137
  $region25: #{gvae_forward.5} parent=0 // pred_fallthru
    _
  // Predicated region
  $region26: #{gvae_forward.5} parent=0 // pred_check
    _
  $region27: #{gvae_forward.5} parent=0 // pred_check_branch
    %141 = sbr.rel (0) target = $region29
  $region28: #{gvae_forward.5} parent=0 // pred_region
    _
  $region29: #{gvae_forward.5} parent=0 // pred_fallthru
    _
  // Predicated region
  $region30: #{gvae_forward.5} parent=0 // pred_check
    _
  $region31: #{gvae_forward.5} parent=0 // pred_check_branch
    %143 = sbr.rel (0) target = $region33
  $region32: #{gvae_forward.5} parent=0 // pred_region
    _
  $region33: #{gvae_forward.5} parent=0 // pred_fallthru
    _

// kernel: gvae_forward.4
$region0: #{gvae_forward.4}
  #allocation0 [shape = 'u32[]', space=smem, size = 0x4, offset = 0x4, fixed_abs, tag = 'smem constant byte address 0x4 - core index']
  #allocation1 [shape = 'u32[144,128]{1,0:T(1,128)}', space=vmem, size = 0x12000, scoped, tag = 'internal scratch']
  #allocation2 [shape = 'f32[16,128]{1,0:T(8,128)}', space=vmem, size = 0x2000, scoped, tag = 'scratch operand']
  %s0 = inlined_call_operand.vmem [shape: bf16[16,16], index: 0, kind: input, shape index: {}]
  %s1 = inlined_call_operand.vmem [shape: bf16[16,128], index: 1, kind: input, shape index: {}]
  %s2 = inlined_call_operand.vmem [shape: f32[1,128], index: 2, kind: input, shape index: {}]
  %s3 = inlined_call_operand.vmem [shape: bf16[128,128], index: 3, kind: input, shape index: {}]
  %s4 = inlined_call_operand.vmem [shape: bf16[16,128], index: 4, kind: output, shape index: {}]
  %s5 = sld [smem:[#allocation0]]
  $region34: #{gvae_forward.4} parent=0
    _
  %s7 = ssub.s32 1, %s5
  %s8 = scalar_select 0, %s7, %s5
  // Predicated region
  $region2: #{gvae_forward.4} parent=0 // pred_check
    _
  $region3: #{gvae_forward.4} parent=0 // pred_check_branch
    %10 = sbr.rel (0) target = $region5
  $region4: #{gvae_forward.4} parent=0 // pred_region
    _
  $region5: #{gvae_forward.4} parent=0 // pred_fallthru
    _
  // Predicated region
  $region6: #{gvae_forward.4} parent=0 // pred_check
    _
  $region7: #{gvae_forward.4} parent=0 // pred_check_branch
    %12 = sbr.rel (0) target = $region9
  $region8: #{gvae_forward.4} parent=0 // pred_region
    _
  $region9: #{gvae_forward.4} parent=0 // pred_fallthru
    _
  // Predicated region
  $region10: #{gvae_forward.4} parent=0 // pred_check
    _
  $region11: #{gvae_forward.4} parent=0 // pred_check_branch
    %14 = sbr.rel (0) target = $region13
  $region12: #{gvae_forward.4} parent=0 // pred_region
    _
  $region13: #{gvae_forward.4} parent=0 // pred_fallthru
    _
  // Predicated region
  $region14: #{gvae_forward.4} parent=0 // pred_check
    _
  $region15: #{gvae_forward.4} parent=0 // pred_check_branch
    %16 = sbr.rel (0) target = $region17
  $region16: #{gvae_forward.4} parent=0 // pred_region
    _
  $region17: #{gvae_forward.4} parent=0 // pred_fallthru
    _
  %p18 = scmp.eq.s32.totalorder 0, 0
  // Predicated region
  $region18: #{gvae_forward.4} parent=0 // pred_check
    %p19 = pneg %p18
  $region19: #{gvae_forward.4} parent=0 // pred_check_branch
    %21 = sbr.rel (%p19) target = $region21
  $region20: #{gvae_forward.4} parent=0 // pred_region
    %22 = vst [vmem:[#allocation2] sm:$0xff] 0.0
    %23 = vst [vmem:[#allocation2 + $0x8] sm:$0xff] 0.0
  $region21: #{gvae_forward.4} parent=0 // pred_fallthru
    _
  %v24 = vld [vmem:[#allocation2] sm:$0xff]
  %v25 = vld [vmem:[#allocation2 + $0x8] sm:$0xff]
  %v26 = vld [vmem:[%s0] sm:$0xf]
  %v27 = vld [vmem:[%s0 + $0x4] sm:$0xf]
  %v28 = vld [vmem:[%s1] sm:$0xf]
  %v29 = vld [vmem:[%s1 + $0x4] sm:$0xf]
  %v32 = vunpack.c.l.b16 %v26
  %v33 = vunpack.c.l.b16 %v27
  %v34 = vpack.c.b16 %v33, %v32
  %v37 = vunpack.c.l.b16 %v28
  %v38 = vunpack.c.l.b16 %v29
  %v39 = vpack.c.b16 %v38, %v37
  %vm41 = vcmask 130048
  %v43 = vsel %vm41, %v34, 0
  %45 = vmatprep.subr.bf16.mxu0 0
  %46 = vmatpush1.bf16.msra.mxu0 0
  %47 = vmatprep.subr.bf16.mxu0 0
  %48 = vmatpush1.bf16.msra.mxu0 0
  %49 = vmatprep.subr.bf16.mxu0 0
  %50 = vmatpush1.bf16.msra.mxu0 0
  %51 = vmatprep.subr.bf16.mxu0 0
  %52 = vmatpush1.bf16.msra.mxu0 0
  %53 = vmatprep.subr.bf16.mxu0 0
  %54 = vmatpush1.bf16.msra.mxu0 0
  %55 = vmatprep.subr.bf16.mxu0 0
  %56 = vmatpush1.bf16.msra.mxu0 0
  %57 = vmatprep.subr.bf16.mxu0 0
  %58 = vmatpush1.bf16.msra.mxu0 0
  %59 = vmatprep.subr.bf16.mxu0 0
  %60 = vmatpush1.bf16.msra.mxu0 %v39
  %61 = vmatprep.subr.bf16.mxu0 0
  %62 = vmatpush2.bf16.msra.mxu0 0
  %63 = vmatprep.subr.bf16.mxu0 0
  %64 = vmatpush2.bf16.msra.mxu0 0
  %65 = vmatprep.subr.bf16.mxu0 0
  %66 = vmatpush2.bf16.msra.mxu0 0
  %67 = vmatprep.subr.bf16.mxu0 0
  %68 = vmatpush2.bf16.msra.mxu0 0
  %69 = vmatprep.subr.bf16.mxu0 0
  %70 = vmatpush2.bf16.msra.mxu0 0
  %71 = vmatprep.subr.bf16.mxu0 0
  %72 = vmatpush2.bf16.msra.mxu0 0
  %73 = vmatprep.subr.bf16.mxu0 0
  %74 = vmatpush2.bf16.msra.mxu0 0
  %75 = vmatprep.subr.bf16.mxu0 0
  %76 = vmatpush2.bf16.msra.mxu0 0
  %77 = vmatprep.mubr.bf16.mxu0 0
  %78 = vmatmul.mubr.bf16.gmra.mxu0 %v43
  %v79 = vpop.f32.mrf.mxu0
  %v80 = vadd.f32 0.0, %v79
  %v81 = vpop.f32.mrf.mxu0
  %v82 = vpop.f32.mrf.mxu0
  %v83 = vadd.f32 0.0, %v82
  %v84 = vpop.f32.mrf.mxu0
  %85 = vdwg.mxu0
  %v86 = vadd.f32 %v24, %v80
  %v87 = vadd.f32 %v25, %v83
  %88 = vst [vmem:[#allocation2] sm:$0xff] %v86
  %89 = vst [vmem:[#allocation2 + $0x8] sm:$0xff] %v87
  // Predicated region
  $region22: #{gvae_forward.4} parent=0 // pred_check
    %p90 = pneg %p18
  $region23: #{gvae_forward.4} parent=0 // pred_check_branch
    %92 = sbr.rel (%p90) target = $region25
  $region24: #{gvae_forward.4} parent=0 // pred_region
    %v93 = vld [vmem:[#allocation2] sm:$0xff]
    %v94 = vld [vmem:[#allocation2 + $0x8] sm:$0xff]
    %v95 = vld [vmem:[%s2] sm:$0x1]
    %v97 = vlaneseq
    %v98 = vshrl.u32 %v97, 7
    %v99 = vsub.s32 0, %v98
    %v100 = vrot.slane %v95, %v99
    %v102 = vadd.f32 %v93, %v100
    %v103 = vadd.f32 %v94, %v100
    %v104 = vpack.c.bf16 %v103, %v102
    %v105 = vld [vmem:[%s3] sm:$0xf]
    %v106 = vld [vmem:[%s3 + $0x4] sm:$0xf]
    %v107 = vld [vmem:[%s3 + $0x8] sm:$0xf]
    %v108 = vld [vmem:[%s3 + $0xc] sm:$0xf]
    %v109 = vld [vmem:[%s3 + $0x10] sm:$0xf]
    %v110 = vld [vmem:[%s3 + $0x14] sm:$0xf]
    %v111 = vld [vmem:[%s3 + $0x18] sm:$0xf]
    %v112 = vld [vmem:[%s3 + $0x1c] sm:$0xf]
    %v113 = vld [vmem:[%s3 + $0x20] sm:$0xf]
    %v114 = vld [vmem:[%s3 + $0x24] sm:$0xf]
    %v115 = vld [vmem:[%s3 + $0x28] sm:$0xf]
    %v116 = vld [vmem:[%s3 + $0x2c] sm:$0xf]
    %v117 = vld [vmem:[%s3 + $0x30] sm:$0xf]
    %v118 = vld [vmem:[%s3 + $0x34] sm:$0xf]
    %v119 = vld [vmem:[%s3 + $0x38] sm:$0xf]
    %v120 = vld [vmem:[%s3 + $0x3c] sm:$0xf]
    %v137 = vunpack.c.l.b16 %v105
    %v138 = vunpack.c.l.b16 %v106
    %v139 = vunpack.c.l.b16 %v107
    %v140 = vunpack.c.l.b16 %v108
    %v141 = vunpack.c.l.b16 %v109
    %v142 = vunpack.c.l.b16 %v110
    %v143 = vunpack.c.l.b16 %v111
    %v144 = vunpack.c.l.b16 %v112
    %v145 = vunpack.c.l.b16 %v113
    %v146 = vunpack.c.l.b16 %v114
    %v147 = vunpack.c.l.b16 %v115
    %v148 = vunpack.c.l.b16 %v116
    %v149 = vunpack.c.l.b16 %v117
    %v150 = vunpack.c.l.b16 %v118
    %v151 = vunpack.c.l.b16 %v119
    %v152 = vunpack.c.l.b16 %v120
    %v153 = vpack.c.b16 %v138, %v137
    %v154 = vpack.c.b16 %v140, %v139
    %v155 = vpack.c.b16 %v142, %v141
    %v156 = vpack.c.b16 %v144, %v143
    %v157 = vpack.c.b16 %v146, %v145
    %v158 = vpack.c.b16 %v148, %v147
    %v159 = vpack.c.b16 %v150, %v149
    %v160 = vpack.c.b16 %v152, %v151
    %169 = vmatprep.subr.bf16.mxu0 0
    %170 = vmatpush1.bf16.msra.mxu0 %v160
    %171 = vmatprep.subr.bf16.mxu0 0
    %172 = vmatpush1.bf16.msra.mxu0 %v159
    %173 = vmatprep.subr.bf16.mxu0 0
    %174 = vmatpush1.bf16.msra.mxu0 %v158
    %175 = vmatprep.subr.bf16.mxu0 0
    %176 = vmatpush1.bf16.msra.mxu0 %v157
    %177 = vmatprep.subr.bf16.mxu0 0
    %178 = vmatpush1.bf16.msra.mxu0 %v156
    %179 = vmatprep.subr.bf16.mxu0 0
    %180 = vmatpush1.bf16.msra.mxu0 %v155
    %181 = vmatprep.subr.bf16.mxu0 0
    %182 = vmatpush1.bf16.msra.mxu0 %v154
    %183 = vmatprep.subr.bf16.mxu0 0
    %184 = vmatpush1.bf16.msra.mxu0 %v153
    %185 = vmatprep.subr.bf16.mxu0 0
    %186 = vmatpush2.bf16.msra.mxu0 0
    %187 = vmatprep.subr.bf16.mxu0 0
    %188 = vmatpush2.bf16.msra.mxu0 0
    %189 = vmatprep.subr.bf16.mxu0 0
    %190 = vmatpush2.bf16.msra.mxu0 0
    %191 = vmatprep.subr.bf16.mxu0 0
    %192 = vmatpush2.bf16.msra.mxu0 0
    %193 = vmatprep.subr.bf16.mxu0 0
    %194 = vmatpush2.bf16.msra.mxu0 0
    %195 = vmatprep.subr.bf16.mxu0 0
    %196 = vmatpush2.bf16.msra.mxu0 0
    %197 = vmatprep.subr.bf16.mxu0 0
    %198 = vmatpush2.bf16.msra.mxu0 0
    %199 = vmatprep.subr.bf16.mxu0 0
    %200 = vmatpush2.bf16.msra.mxu0 0
    %201 = vmatprep.mubr.bf16.mxu0 0
    %202 = vmatmul.mubr.bf16.gmra.mxu0 %v104
    %v203 = vpop.f32.mrf.mxu0
    %v204 = vadd.f32 0.0, %v203
    %v205 = vpop.f32.mrf.mxu0
    %v206 = vpop.f32.mrf.mxu0
    %v207 = vadd.f32 0.0, %v206
    %v208 = vpop.f32.mrf.mxu0
    %209 = vdwg.mxu0
    %v210 = vpack.c.bf16 %v207, %v204
    %v212 = vunpack.c.l.b16 %v210
    %v213 = vunpack.c.h.b16 %v210
    %v214 = vpack.c.b16 %v212, %v212
    %v215 = vpack.c.b16 %v213, %v213
    %218 = vst [vmem:[%s4] sm:$0xf] %v214
    %219 = vst [vmem:[%s4 + $0x4] sm:$0xf] %v215
  $region25: #{gvae_forward.4} parent=0 // pred_fallthru
    _
  // Predicated region
  $region26: #{gvae_forward.4} parent=0 // pred_check
    _
  $region27: #{gvae_forward.4} parent=0 // pred_check_branch
    %221 = sbr.rel (0) target = $region29
  $region28: #{gvae_forward.4} parent=0 // pred_region
    _
  $region29: #{gvae_forward.4} parent=0 // pred_fallthru
    _
  // Predicated region
  $region30: #{gvae_forward.4} parent=0 // pred_check
    _
  $region31: #{gvae_forward.4} parent=0 // pred_check_branch
    %223 = sbr.rel (0) target = $region33
  $region32: #{gvae_forward.4} parent=0 // pred_region
    _
  $region33: #{gvae_forward.4} parent=0 // pred_fallthru
    _

// kernel: gvae_forward.3
$region0: #{gvae_forward.3}
  #allocation0 [shape = 'u32[]', space=smem, size = 0x4, offset = 0x4, fixed_abs, tag = 'smem constant byte address 0x4 - core index']
  #allocation1 [shape = 'u32[144,128]{1,0:T(1,128)}', space=vmem, size = 0x12000, scoped, tag = 'internal scratch']
  #allocation2 [shape = 'f32[16,128]{1,0:T(8,128)}', space=vmem, size = 0x2000, scoped, tag = 'scratch operand']
  %s0 = inlined_call_operand.vmem [shape: bf16[16,16], index: 0, kind: input, shape index: {}]
  %s1 = inlined_call_operand.vmem [shape: bf16[16,4], index: 1, kind: input, shape index: {}]
  %s2 = inlined_call_operand.vmem [shape: bf16[4,128], index: 2, kind: input, shape index: {}]
  %s3 = inlined_call_operand.vmem [shape: f32[1,128], index: 3, kind: input, shape index: {}]
  %s4 = inlined_call_operand.vmem [shape: bf16[128,128], index: 4, kind: input, shape index: {}]
  %s5 = inlined_call_operand.vmem [shape: bf16[16,128], index: 5, kind: output, shape index: {}]
  %s6 = sld [smem:[#allocation0]]
  $region38: #{gvae_forward.3} parent=0
    _
  %s8 = ssub.s32 1, %s6
  %s9 = scalar_select 0, %s8, %s6
  // Predicated region
  $region2: #{gvae_forward.3} parent=0 // pred_check
    _
  $region3: #{gvae_forward.3} parent=0 // pred_check_branch
    %11 = sbr.rel (0) target = $region5
  $region4: #{gvae_forward.3} parent=0 // pred_region
    _
  $region5: #{gvae_forward.3} parent=0 // pred_fallthru
    _
  // Predicated region
  $region6: #{gvae_forward.3} parent=0 // pred_check
    _
  $region7: #{gvae_forward.3} parent=0 // pred_check_branch
    %13 = sbr.rel (0) target = $region9
  $region8: #{gvae_forward.3} parent=0 // pred_region
    _
  $region9: #{gvae_forward.3} parent=0 // pred_fallthru
    _
  // Predicated region
  $region10: #{gvae_forward.3} parent=0 // pred_check
    _
  $region11: #{gvae_forward.3} parent=0 // pred_check_branch
    %15 = sbr.rel (0) target = $region13
  $region12: #{gvae_forward.3} parent=0 // pred_region
    _
  $region13: #{gvae_forward.3} parent=0 // pred_fallthru
    _
  // Predicated region
  $region14: #{gvae_forward.3} parent=0 // pred_check
    _
  $region15: #{gvae_forward.3} parent=0 // pred_check_branch
    %17 = sbr.rel (0) target = $region17
  $region16: #{gvae_forward.3} parent=0 // pred_region
    _
  $region17: #{gvae_forward.3} parent=0 // pred_fallthru
    _
  // Predicated region
  $region18: #{gvae_forward.3} parent=0 // pred_check
    _
  $region19: #{gvae_forward.3} parent=0 // pred_check_branch
    %19 = sbr.rel (0) target = $region21
  $region20: #{gvae_forward.3} parent=0 // pred_region
    _
  $region21: #{gvae_forward.3} parent=0 // pred_fallthru
    _
  %p21 = scmp.eq.s32.totalorder 0, 0
  // Predicated region
  $region22: #{gvae_forward.3} parent=0 // pred_check
    %p22 = pneg %p21
  $region23: #{gvae_forward.3} parent=0 // pred_check_branch
    %24 = sbr.rel (%p22) target = $region25
  $region24: #{gvae_forward.3} parent=0 // pred_region
    %25 = vst [vmem:[#allocation2] sm:$0xff] 0.0
    %26 = vst [vmem:[#allocation2 + $0x8] sm:$0xff] 0.0
  $region25: #{gvae_forward.3} parent=0 // pred_fallthru
    _
  %v27 = vld [vmem:[%s1] sm:$0xf]
  %v28 = vld [vmem:[%s1 + $0x4] sm:$0xf]
  %v29 = vld [vmem:[%s2] sm:$0x3]
  %v32 = vunpack.c.l.b16 %v27
  %v33 = vunpack.c.l.b16 %v28
  %v34 = vpack.c.b16 %v33, %v32
  %vm35 = vcmask 31744
  %v37 = vsel %vm35, %v34, 0
  %vm39 = vcmask 1041408
  %v41 = vsel %vm39, %v29, 0
  %43 = vmatprep.subr.bf16.mxu0 0
  %44 = vmatpush1.bf16.msra.mxu0 0
  %45 = vmatprep.subr.bf16.mxu0 0
  %46 = vmatpush1.bf16.msra.mxu0 0
  %47 = vmatprep.subr.bf16.mxu0 0
  %48 = vmatpush1.bf16.msra.mxu0 0
  %49 = vmatprep.subr.bf16.mxu0 0
  %50 = vmatpush1.bf16.msra.mxu0 0
  %51 = vmatprep.subr.bf16.mxu0 0
  %52 = vmatpush1.bf16.msra.mxu0 0
  %53 = vmatprep.subr.bf16.mxu0 0
  %54 = vmatpush1.bf16.msra.mxu0 0
  %55 = vmatprep.subr.bf16.mxu0 0
  %56 = vmatpush1.bf16.msra.mxu0 0
  %57 = vmatprep.subr.bf16.mxu0 0
  %58 = vmatpush1.bf16.msra.mxu0 %v41
  %59 = vmatprep.subr.bf16.mxu0 0
  %60 = vmatpush2.bf16.msra.mxu0 0
  %61 = vmatprep.subr.bf16.mxu0 0
  %62 = vmatpush2.bf16.msra.mxu0 0
  %63 = vmatprep.subr.bf16.mxu0 0
  %64 = vmatpush2.bf16.msra.mxu0 0
  %65 = vmatprep.subr.bf16.mxu0 0
  %66 = vmatpush2.bf16.msra.mxu0 0
  %67 = vmatprep.subr.bf16.mxu0 0
  %68 = vmatpush2.bf16.msra.mxu0 0
  %69 = vmatprep.subr.bf16.mxu0 0
  %70 = vmatpush2.bf16.msra.mxu0 0
  %71 = vmatprep.subr.bf16.mxu0 0
  %72 = vmatpush2.bf16.msra.mxu0 0
  %73 = vmatprep.subr.bf16.mxu0 0
  %74 = vmatpush2.bf16.msra.mxu0 0
  %75 = vmatprep.mubr.bf16.mxu0 0
  %76 = vmatmul.mubr.bf16.gmra.mxu0 %v37
  %v77 = vpop.f32.mrf.mxu0
  %v78 = vadd.f32 0.0, %v77
  %v79 = vpop.f32.mrf.mxu0
  %v80 = vpop.f32.mrf.mxu0
  %v81 = vadd.f32 0.0, %v80
  %v82 = vpop.f32.mrf.mxu0
  %83 = vdwg.mxu0
  %v84 = vld [vmem:[#allocation2] sm:$0xff]
  %v85 = vld [vmem:[#allocation2 + $0x8] sm:$0xff]
  %v86 = vld [vmem:[%s0] sm:$0xf]
  %v87 = vld [vmem:[%s0 + $0x4] sm:$0xf]
  %v88 = vpack.c.bf16 %v81, %v78
  %v91 = vunpack.c.l.b16 %v86
  %v92 = vunpack.c.l.b16 %v87
  %v93 = vpack.c.b16 %v92, %v91
  %vm94 = vcmask 130048
  %v96 = vsel %vm94, %v93, 0
  %98 = vmatprep.subr.bf16.mxu0 0
  %99 = vmatpush1.bf16.msra.mxu0 0
  %100 = vmatprep.subr.bf16.mxu0 0
  %101 = vmatpush1.bf16.msra.mxu0 0
  %102 = vmatprep.subr.bf16.mxu0 0
  %103 = vmatpush1.bf16.msra.mxu0 0
  %104 = vmatprep.subr.bf16.mxu0 0
  %105 = vmatpush1.bf16.msra.mxu0 0
  %106 = vmatprep.subr.bf16.mxu0 0
  %107 = vmatpush1.bf16.msra.mxu0 0
  %108 = vmatprep.subr.bf16.mxu0 0
  %109 = vmatpush1.bf16.msra.mxu0 0
  %110 = vmatprep.subr.bf16.mxu0 0
  %111 = vmatpush1.bf16.msra.mxu0 0
  %112 = vmatprep.subr.bf16.mxu0 0
  %113 = vmatpush1.bf16.msra.mxu0 %v88
  %114 = vmatprep.subr.bf16.mxu0 0
  %115 = vmatpush2.bf16.msra.mxu0 0
  %116 = vmatprep.subr.bf16.mxu0 0
  %117 = vmatpush2.bf16.msra.mxu0 0
  %118 = vmatprep.subr.bf16.mxu0 0
  %119 = vmatpush2.bf16.msra.mxu0 0
  %120 = vmatprep.subr.bf16.mxu0 0
  %121 = vmatpush2.bf16.msra.mxu0 0
  %122 = vmatprep.subr.bf16.mxu0 0
  %123 = vmatpush2.bf16.msra.mxu0 0
  %124 = vmatprep.subr.bf16.mxu0 0
  %125 = vmatpush2.bf16.msra.mxu0 0
  %126 = vmatprep.subr.bf16.mxu0 0
  %127 = vmatpush2.bf16.msra.mxu0 0
  %128 = vmatprep.subr.bf16.mxu0 0
  %129 = vmatpush2.bf16.msra.mxu0 0
  %130 = vmatprep.mubr.bf16.mxu0 0
  %131 = vmatmul.mubr.bf16.gmra.mxu0 %v96
  %v132 = vpop.f32.mrf.mxu0
  %v133 = vadd.f32 0.0, %v132
  %v134 = vpop.f32.mrf.mxu0
  %v135 = vpop.f32.mrf.mxu0
  %v136 = vadd.f32 0.0, %v135
  %v137 = vpop.f32.mrf.mxu0
  %138 = vdwg.mxu0
  %v139 = vadd.f32 %v84, %v133
  %v140 = vadd.f32 %v85, %v136
  %141 = vst [vmem:[#allocation2] sm:$0xff] %v139
  %142 = vst [vmem:[#allocation2 + $0x8] sm:$0xff] %v140
  // Predicated region
  $region26: #{gvae_forward.3} parent=0 // pred_check
    %p143 = pneg %p21
  $region27: #{gvae_forward.3} parent=0 // pred_check_branch
    %145 = sbr.rel (%p143) target = $region29
  $region28: #{gvae_forward.3} parent=0 // pred_region
    %v146 = vld [vmem:[#allocation2] sm:$0xff]
    %v147 = vld [vmem:[#allocation2 + $0x8] sm:$0xff]
    %v148 = vld [vmem:[%s3] sm:$0x1]
    %v150 = vlaneseq
    %v151 = vshrl.u32 %v150, 7
    %v152 = vsub.s32 0, %v151
    %v153 = vrot.slane %v148, %v152
    %v155 = vadd.f32 %v146, %v153
    %v156 = vadd.f32 %v147, %v153
    %v157 = vmax.f32 %v155, 0.0
    %v158 = vmax.f32 %v156, 0.0
    %v159 = vpack.c.bf16 %v158, %v157
    %v160 = vld [vmem:[%s4] sm:$0xf]
    %v161 = vld [vmem:[%s4 + $0x4] sm:$0xf]
    %v162 = vld [vmem:[%s4 + $0x8] sm:$0xf]
    %v163 = vld [vmem:[%s4 + $0xc] sm:$0xf]
    %v164 = vld [vmem:[%s4 + $0x10] sm:$0xf]
    %v165 = vld [vmem:[%s4 + $0x14] sm:$0xf]
    %v166 = vld [vmem:[%s4 + $0x18] sm:$0xf]
    %v167 = vld [vmem:[%s4 + $0x1c] sm:$0xf]
    %v168 = vld [vmem:[%s4 + $0x20] sm:$0xf]
    %v169 = vld [vmem:[%s4 + $0x24] sm:$0xf]
    %v170 = vld [vmem:[%s4 + $0x28] sm:$0xf]
    %v171 = vld [vmem:[%s4 + $0x2c] sm:$0xf]
    %v172 = vld [vmem:[%s4 + $0x30] sm:$0xf]
    %v173 = vld [vmem:[%s4 + $0x34] sm:$0xf]
    %v174 = vld [vmem:[%s4 + $0x38] sm:$0xf]
    %v175 = vld [vmem:[%s4 + $0x3c] sm:$0xf]
    %v192 = vunpack.c.l.b16 %v160
    %v193 = vunpack.c.l.b16 %v161
    %v194 = vunpack.c.l.b16 %v162
    %v195 = vunpack.c.l.b16 %v163
    %v196 = vunpack.c.l.b16 %v164
    %v197 = vunpack.c.l.b16 %v165
    %v198 = vunpack.c.l.b16 %v166
    %v199 = vunpack.c.l.b16 %v167
    %v200 = vunpack.c.l.b16 %v168
    %v201 = vunpack.c.l.b16 %v169
    %v202 = vunpack.c.l.b16 %v170
    %v203 = vunpack.c.l.b16 %v171
    %v204 = vunpack.c.l.b16 %v172
    %v205 = vunpack.c.l.b16 %v173
    %v206 = vunpack.c.l.b16 %v174
    %v207 = vunpack.c.l.b16 %v175
    %v208 = vpack.c.b16 %v193, %v192
    %v209 = vpack.c.b16 %v195, %v194
    %v210 = vpack.c.b16 %v197, %v196
    %v211 = vpack.c.b16 %v199, %v198
    %v212 = vpack.c.b16 %v201, %v200
    %v213 = vpack.c.b16 %v203, %v202
    %v214 = vpack.c.b16 %v205, %v204
    %v215 = vpack.c.b16 %v207, %v206
    %224 = vmatprep.subr.bf16.mxu0 0
    %225 = vmatpush1.bf16.msra.mxu0 %v215
    %226 = vmatprep.subr.bf16.mxu0 0
    %227 = vmatpush1.bf16.msra.mxu0 %v214
    %228 = vmatprep.subr.bf16.mxu0 0
    %229 = vmatpush1.bf16.msra.mxu0 %v213
    %230 = vmatprep.subr.bf16.mxu0 0
    %231 = vmatpush1.bf16.msra.mxu0 %v212
    %232 = vmatprep.subr.bf16.mxu0 0
    %233 = vmatpush1.bf16.msra.mxu0 %v211
    %234 = vmatprep.subr.bf16.mxu0 0
    %235 = vmatpush1.bf16.msra.mxu0 %v210
    %236 = vmatprep.subr.bf16.mxu0 0
    %237 = vmatpush1.bf16.msra.mxu0 %v209
    %238 = vmatprep.subr.bf16.mxu0 0
    %239 = vmatpush1.bf16.msra.mxu0 %v208
    %240 = vmatprep.subr.bf16.mxu0 0
    %241 = vmatpush2.bf16.msra.mxu0 0
    %242 = vmatprep.subr.bf16.mxu0 0
    %243 = vmatpush2.bf16.msra.mxu0 0
    %244 = vmatprep.subr.bf16.mxu0 0
    %245 = vmatpush2.bf16.msra.mxu0 0
    %246 = vmatprep.subr.bf16.mxu0 0
    %247 = vmatpush2.bf16.msra.mxu0 0
    %248 = vmatprep.subr.bf16.mxu0 0
    %249 = vmatpush2.bf16.msra.mxu0 0
    %250 = vmatprep.subr.bf16.mxu0 0
    %251 = vmatpush2.bf16.msra.mxu0 0
    %252 = vmatprep.subr.bf16.mxu0 0
    %253 = vmatpush2.bf16.msra.mxu0 0
    %254 = vmatprep.subr.bf16.mxu0 0
    %255 = vmatpush2.bf16.msra.mxu0 0
    %256 = vmatprep.mubr.bf16.mxu0 0
    %257 = vmatmul.mubr.bf16.gmra.mxu0 %v159
    %v258 = vpop.f32.mrf.mxu0
    %v259 = vadd.f32 0.0, %v258
    %v260 = vpop.f32.mrf.mxu0
    %v261 = vpop.f32.mrf.mxu0
    %v262 = vadd.f32 0.0, %v261
    %v263 = vpop.f32.mrf.mxu0
    %264 = vdwg.mxu0
    %v265 = vpack.c.bf16 %v262, %v259
    %v267 = vunpack.c.l.b16 %v265
    %v268 = vunpack.c.h.b16 %v265
    %v269 = vpack.c.b16 %v267, %v267
    %v270 = vpack.c.b16 %v268, %v268
    %273 = vst [vmem:[%s5] sm:$0xf] %v269
    %274 = vst [vmem:[%s5 + $0x4] sm:$0xf] %v270
  $region29: #{gvae_forward.3} parent=0 // pred_fallthru
    _
  // Predicated region
  $region30: #{gvae_forward.3} parent=0 // pred_check
    _
  $region31: #{gvae_forward.3} parent=0 // pred_check_branch
    %276 = sbr.rel (0) target = $region33
  $region32: #{gvae_forward.3} parent=0 // pred_region
    _
  $region33: #{gvae_forward.3} parent=0 // pred_fallthru
    _
  // Predicated region
  $region34: #{gvae_forward.3} parent=0 // pred_check
    _
  $region35: #{gvae_forward.3} parent=0 // pred_check_branch
    %278 = sbr.rel (0) target = $region37
  $region36: #{gvae_forward.3} parent=0 // pred_region
    _
  $region37: #{gvae_forward.3} parent=0 // pred_fallthru
    _

</llo_original>
